<compile_context>
chip_gen: v6e
topology: v6e:2x2x1
jax: 0.10.0
libtpu: 0.0.40
codegen_flags: <defaults>
</compile_context>

<pallas_src>
import functools

import jax
import jax.numpy as jnp
import numpy as np
from jax.experimental import pallas as pl
from jax.experimental.pallas import tpu as pltpu

IGNORE_INDEX = -100.0
_LOGIT_PAD = -1e30   # finite: softplus(-1e30) == 0 and (-1e30) * 0 == 0 exactly


def _cdiv(a: int, b: int) -> int:
    return -(-a // b)


def _round_up(n: int, m: int) -> int:
    return (n + m - 1) // m * m


def _vmem_capacity_bytes() -> int:
    try:
        info = pltpu.get_tpu_info()
        cap = getattr(info, "vmem_capacity_bytes", None)
        if cap:
            return int(cap)
    except Exception:
        pass
    return 64 * 1024 * 1024   # conservative default (v7x has the smallest VMEM)


def _make_kernel(A: int, B: int, C: int, mask_cols: bool, mask_rows: bool):
    def kernel(x_ref, y_ref, o_ref, acc_ref, mn_ref):
        # x_ref: (TB, TC) f32   y_ref: (TB, A, TC)   o_ref: (TB, 8) f32
        # acc_ref/mn_ref: (TB, A) f32 scratch (per-annotator BCE sum / running min)
        i = pl.program_id(0)
        j = pl.program_id(1)
        nj = pl.num_programs(1)
        TB, TC = x_ref.shape

        @pl.when(j == 0)
        def _init():
            acc_ref[...] = jnp.zeros_like(acc_ref)
            mn_ref[...] = jnp.zeros_like(mn_ref)

        x = x_ref[...]                                            # (TB, TC) f32
        if mask_cols:
            col = jax.lax.broadcasted_iota(jnp.int32, (TB, TC), 1) + j * TC
            valid = col < C
            # Invalid columns: logit -> -1e30 so softplus == 0 and x*0 == 0.
            x = jnp.where(valid, x, _LOGIT_PAD)

        # Annotator-invariant softplus term, computed once per logits tile:
        # sp(x) = max(x, 0) + log1p(exp(-|x|)).
        sp = jnp.maximum(x, 0.0) + jnp.log1p(jnp.exp(-jnp.abs(x)))
        sp_sum = jnp.sum(sp, axis=-1, keepdims=True)              # (TB, 1)

        # Annotator-dependent terms on dense (TB, TC) planes (static A unroll).
        xy_cols, mn_cols = [], []
        for a in range(A):
            y_a = y_ref[:, a, :].astype(jnp.float32)              # (TB, TC)
            if mask_cols:
                y_a = jnp.where(valid, y_a, 0.0)                  # 0 is a non-pad value
            xy_cols.append(jnp.sum(x * y_a, axis=-1, keepdims=True))
            mn_cols.append(jnp.min(y_a, axis=-1, keepdims=True))
        xy = jnp.concatenate(xy_cols, axis=-1) if A > 1 else xy_cols[0]   # (TB, A)
        mn = jnp.concatenate(mn_cols, axis=-1) if A > 1 else mn_cols[0]   # (TB, A)

        acc_ref[...] += sp_sum - xy
        mn_ref[...] = jnp.minimum(mn_ref[...], mn)

        @pl.when(j == nj - 1)
        def _finalize():
            # min(y) <= -99.5 detects the -100 ignore sentinel anywhere along C
            # (valid targets are in [0, 1]).
            is_pad = mn_ref[...] <= IGNORE_INDEX + 0.5            # (TB, A)
            masked = jnp.where(is_pad, jnp.inf, acc_ref[...])
            per_batch = jnp.min(masked, axis=-1, keepdims=True)   # (TB, 1)
            if mask_rows:
                row = jax.lax.broadcasted_iota(jnp.int32, (TB, 1), 0) + i * TB
                per_batch = jnp.where(row < B, per_batch, 0.0)
            lane = jax.lax.broadcasted_iota(jnp.int32, o_ref.shape, 1)
            o_ref[...] = jnp.where(lane == 0, per_batch, 0.0)

    return kernel


@functools.partial(jax.jit, static_argnames=("max_tc",))
def agg_over_anns_bce_loss(logits: jax.Array, targets: jax.Array, *,
                           max_tc: int = 4096) -> jax.Array:
    """logits: (B, C) float; targets: (B, A, C) float (bf16 recommended)."""
    B, C = logits.shape
    Bt, A, Ct = targets.shape
    assert (Bt, Ct) == (B, C)

    logits = logits.astype(jnp.float32)
    # Keep targets narrow in HBM when possible ({0,1,-100} are exact in bf16);
    # the upcast to f32 happens per dense (TB, TC) plane inside the kernel.
    if targets.dtype not in (np.dtype(jnp.bfloat16), np.dtype(jnp.float32)):
        targets = targets.astype(jnp.float32)
    tgt_item = np.dtype(targets.dtype).itemsize

    # ---- class (lane) tile: full C when it fits, else 128-aligned tiles with
    #      an in-kernel mask for the ragged last tile (no padding copies). ----
    max_tc = max(128, int(max_tc))
    if C <= max_tc:
        TC = C
    else:
        TC = max(128, min(512, (max_tc // 128) * 128))
    nC = _cdiv(C, TC)
    mask_cols = (C % TC) != 0

    # ---- batch (sublane) tile, sized from *physical* VMEM bytes. ----
    cap = _vmem_capacity_bytes()
    vmem_limit = int(min(cap * 0.70, 100 * 1024 * 1024))
    budget = int(vmem_limit * 0.80)

    tcp = _round_up(TC, 128)                       # VMEM lane padding
    pack = max(1, 4 // tgt_item)                   # sub-32-bit sublane packing
    a_phys = _round_up(A, 8 * pack)                # physical sublanes of the A axis
    per_row = (2 * a_phys * tcp * tgt_item         # targets block, double buffered
               + 2 * tcp * 4                       # logits block, double buffered
               + 2 * 128 * 4                       # (TB, 8) output block, double buffered
               + 2 * 128 * 4)                      # two (TB, A) f32 scratch accumulators
    TB = max(8, min(1024, (budget // per_row) // 8 * 8))
    TB = min(TB, _round_up(B, 8))
    if B >= 16:                                    # keep nB >= 2 so both v7x cores work
        TB = min(TB, max(8, _round_up(_cdiv(B, 2), 8)))
    nB = _cdiv(B, TB)
    mask_rows = (B % TB) != 0

    out = pl.pallas_call(
        _make_kernel(A, B, C, mask_cols, mask_rows),
        out_shape=jax.ShapeDtypeStruct((nB * TB, 8), jnp.float32),
        grid_spec=pltpu.PrefetchScalarGridSpec(
            num_scalar_prefetch=0,
            grid=(nB, nC),
            in_specs=[
                pl.BlockSpec((TB, TC), lambda i, j: (i, j)),        # logits
                pl.BlockSpec((TB, A, TC), lambda i, j: (i, 0, j)),  # targets (full A)
            ],
            out_specs=pl.BlockSpec((TB, 8), lambda i, j: (i, 0)),
            scratch_shapes=[
                pltpu.VMEM((TB, A), jnp.float32),   # running per-annotator BCE sum
                pltpu.VMEM((TB, A), jnp.float32),   # running min of targets (pad flag)
            ],
        ),
        compiler_params=pltpu.CompilerParams(
            dimension_semantics=("parallel", "arbitrary"),
            vmem_limit_bytes=vmem_limit,
        ),
    )(logits, targets)

    # Only lane 0 of valid rows is non-zero; invalid rows were zeroed in-kernel.
    return jnp.sum(out)


def _reference(logits, targets):
    # Plain-JAX reference mirroring the PyTorch module (aggfunc='min').
    x = logits[:, None, :].astype(jnp.float32)
    y = targets.astype(jnp.float32)
    loss = jnp.maximum(x, 0.0) - x * y + jnp.log1p(jnp.exp(-jnp.abs(x)))
    per_ann = loss.sum(-1)
    is_pad = jnp.any(y == IGNORE_INDEX, axis=-1)
    masked = jnp.where(is_pad, jnp.inf, per_ann)
    return jnp.min(masked, axis=-1).sum()


# TODO(synk): the module's 'max'/'mean' agg branches are never reached by its
# forward (aggfunc is fixed to 'min'); only 'min' is implemented here.

if __name__ == "__main__":
    key = jax.random.PRNGKey(0)
    k1, k2, k3, k4, k5, k6 = jax.random.split(key, 6)

    # --- 1) tiny case: B < 8 (partial batch tile), single class tile, pads ---
    B, A, C = 4, 3, 16
    logits = jax.random.normal(k1, (B, C), dtype=jnp.float32)
    targets = jax.random.bernoulli(k2, 0.5, (B, A, C)).astype(jnp.bfloat16)
    targets = targets.at[0, 2, :].set(IGNORE_INDEX)
    targets = targets.at[1, 1, 0].set(IGNORE_INDEX)   # any(-100) along C => padded
    targets = targets.at[3, 0, :].set(IGNORE_INDEX)
    targets = targets.at[3, 2, 5].set(IGNORE_INDEX)
    out = jax.block_until_ready(agg_over_anns_bce_loss(logits, targets))
    ref = _reference(logits, targets)
    assert np.allclose(np.asarray(out), np.asarray(ref), rtol=1e-5, atol=1e-5), (
        f"mismatch (small): kernel={out} ref={ref}")

    # --- 2) tiled class axis with a ragged last tile (nC=3, 1280 % 512 != 0) ---
    B2, A2, C2 = 8, 2, 1280
    logits2 = jax.random.normal(k3, (B2, C2), dtype=jnp.float32)
    targets2 = jax.random.bernoulli(k4, 0.5, (B2, A2, C2)).astype(jnp.bfloat16)
    targets2 = targets2.at[0, 1, :].set(IGNORE_INDEX)
    targets2 = targets2.at[5, 0, 7].set(IGNORE_INDEX)
    out2 = jax.block_until_ready(agg_over_anns_bce_loss(logits2, targets2, max_tc=512))
    ref2 = _reference(logits2, targets2)
    assert np.allclose(np.asarray(out2), np.asarray(ref2), rtol=1e-4, atol=1e-3), (
        f"mismatch (ragged C): kernel={out2} ref={ref2}")

    # --- 3) multiple batch tiles (nB >= 2) + ragged class tile, f32 targets ---
    B3, A3, C3 = 48, 3, 384
    logits3 = jax.random.normal(k5, (B3, C3), dtype=jnp.float32)
    targets3 = jax.random.bernoulli(k6, 0.5, (B3, A3, C3)).astype(jnp.float32)
    targets3 = targets3.at[7, 1, :].set(IGNORE_INDEX)
    targets3 = targets3.at[30, 0, 100].set(IGNORE_INDEX)
    out3 = jax.block_until_ready(agg_over_anns_bce_loss(logits3, targets3, max_tc=256))
    ref3 = _reference(logits3, targets3)
    assert np.allclose(np.asarray(out3), np.asarray(ref3), rtol=1e-4, atol=1e-3), (
        f"mismatch (multi B-tile): kernel={out3} ref={ref3}")

    print("KERNEL_OK")
</pallas_src>

<mosaic_0001>
module attributes {stable_mosaic.version = 11 : i64} {
  func.func @kernel(%arg0: i32, %arg1: i32, %arg2: memref<8x16xf32, #tpu.memory_space<vmem>>, %arg3: memref<8x3x16xbf16, #tpu.memory_space<vmem>>, %arg4: memref<8x8xf32, #tpu.memory_space<vmem>>, %arg5: memref<8x3xf32, #tpu.memory_space<vmem>>, %arg6: memref<8x3xf32, #tpu.memory_space<vmem>>) attributes {dimension_semantics = [#tpu.dimension_semantics<parallel>, #tpu.dimension_semantics<arbitrary>], iteration_bounds = array<i64: 1, 1>, scalar_prefetch = 0 : i64, scratch_operands = 2 : i64, tpu.core_type = #tpu.core_type<tc>, window_params = [{transform_indices = @transform_0, window_bounds = array<i64: 8, 16>}, {transform_indices = @transform_1, window_bounds = array<i64: 8, 3, 16>}, {transform_indices = @transform_2, window_bounds = array<i64: 8, 8>}]} {
    %c0_i32 = arith.constant 0 : i32
    %0 = arith.cmpi eq, %arg1, %c0_i32 : i32
    %1 = arith.extui %0 : i1 to i32
    %c0_i32_0 = arith.constant 0 : i32
    %2 = arith.cmpi ne, %1, %c0_i32_0 : i32
    scf.if %2 {
      %cst_27 = arith.constant 0.000000e+00 : f32
      %51 = vector.broadcast %cst_27 : f32 to vector<8x3xf32>
      %c0_28 = arith.constant 0 : index
      %c0_29 = arith.constant 0 : index
      %52 = vector.load %arg5[%c0_28, %c0_29] : memref<8x3xf32, #tpu.memory_space<vmem>>, vector<8x3xf32>
      tpu.vector_store %arg5[%c0_28, %c0_29], %51 {strides = array<i32>} : memref<8x3xf32, #tpu.memory_space<vmem>>, vector<8x3xf32>,
      %cst_30 = arith.constant 0.000000e+00 : f32
      %53 = vector.broadcast %cst_30 : f32 to vector<8x3xf32>
      %c0_31 = arith.constant 0 : index
      %c0_32 = arith.constant 0 : index
      %54 = vector.load %arg6[%c0_31, %c0_32] : memref<8x3xf32, #tpu.memory_space<vmem>>, vector<8x3xf32>
      tpu.vector_store %arg6[%c0_31, %c0_32], %53 {strides = array<i32>} : memref<8x3xf32, #tpu.memory_space<vmem>>, vector<8x3xf32>,
    } else {
    }
    %c0 = arith.constant 0 : index
    %c0_1 = arith.constant 0 : index
    %3 = vector.load %arg2[%c0, %c0_1] : memref<8x16xf32, #tpu.memory_space<vmem>>, vector<8x16xf32>
    %cst = arith.constant 0.000000e+00 : f32
    %4 = vector.broadcast %cst : f32 to vector<8x16xf32>
    %5 = arith.maximumf %3, %4 : vector<8x16xf32>
    %6 = math.absf %3 : vector<8x16xf32>
    %cst_2 = arith.constant 0.000000e+00 : f32
    %7 = vector.broadcast %cst_2 : f32 to vector<8x16xf32>
    %8 = arith.subf %7, %6 : vector<8x16xf32>
    %9 = math.exp %8 : vector<8x16xf32>
    %10 = math.log1p %9 : vector<8x16xf32>
    %11 = arith.addf %5, %10 : vector<8x16xf32>
    %cst_3 = arith.constant dense<0.000000e+00> : vector<8xf32>
    %12 = vector.multi_reduction <add>, %11, %cst_3 [1] : vector<8x16xf32> to vector<8xf32>
    %13 = vector.shape_cast %12 : vector<8xf32> to vector<8x1xf32>
    %c0_4 = arith.constant 0 : index
    %c0_5 = arith.constant 0 : index
    %c0_6 = arith.constant 0 : index
    %14 = vector.load %arg3[%c0_4, %c0_5, %c0_6] : memref<8x3x16xbf16, #tpu.memory_space<vmem>>, vector<8x1x16xbf16>
    %15 = vector.shape_cast %14 : vector<8x1x16xbf16> to vector<8x16xbf16>
    %16 = arith.extf %15 : vector<8x16xbf16> to vector<8x16xf32>
    %17 = arith.mulf %3, %16 : vector<8x16xf32>
    %cst_7 = arith.constant dense<0.000000e+00> : vector<8xf32>
    %18 = vector.multi_reduction <add>, %17, %cst_7 [1] : vector<8x16xf32> to vector<8xf32>
    %19 = vector.shape_cast %18 : vector<8xf32> to vector<8x1xf32>
    %cst_8 = arith.constant dense<0x7F800000> : vector<8xf32>
    %20 = vector.multi_reduction <minimumf>, %16, %cst_8 [1] : vector<8x16xf32> to vector<8xf32>
    %21 = vector.shape_cast %20 : vector<8xf32> to vector<8x1xf32>
    %c0_9 = arith.constant 0 : index
    %c1 = arith.constant 1 : index
    %c0_10 = arith.constant 0 : index
    %22 = vector.load %arg3[%c0_9, %c1, %c0_10] : memref<8x3x16xbf16, #tpu.memory_space<vmem>>, vector<8x1x16xbf16>
    %23 = vector.shape_cast %22 : vector<8x1x16xbf16> to vector<8x16xbf16>
    %24 = arith.extf %23 : vector<8x16xbf16> to vector<8x16xf32>
    %25 = arith.mulf %3, %24 : vector<8x16xf32>
    %cst_11 = arith.constant dense<0.000000e+00> : vector<8xf32>
    %26 = vector.multi_reduction <add>, %25, %cst_11 [1] : vector<8x16xf32> to vector<8xf32>
    %27 = vector.shape_cast %26 : vector<8xf32> to vector<8x1xf32>
    %cst_12 = arith.constant dense<0x7F800000> : vector<8xf32>
    %28 = vector.multi_reduction <minimumf>, %24, %cst_12 [1] : vector<8x16xf32> to vector<8xf32>
    %29 = vector.shape_cast %28 : vector<8xf32> to vector<8x1xf32>
    %c0_13 = arith.constant 0 : index
    %c2 = arith.constant 2 : index
    %c0_14 = arith.constant 0 : index
    %30 = vector.load %arg3[%c0_13, %c2, %c0_14] : memref<8x3x16xbf16, #tpu.memory_space<vmem>>, vector<8x1x16xbf16>
    %31 = vector.shape_cast %30 : vector<8x1x16xbf16> to vector<8x16xbf16>
    %32 = arith.extf %31 : vector<8x16xbf16> to vector<8x16xf32>
    %33 = arith.mulf %3, %32 : vector<8x16xf32>
    %cst_15 = arith.constant dense<0.000000e+00> : vector<8xf32>
    %34 = vector.multi_reduction <add>, %33, %cst_15 [1] : vector<8x16xf32> to vector<8xf32>
    %35 = vector.shape_cast %34 : vector<8xf32> to vector<8x1xf32>
    %cst_16 = arith.constant dense<0x7F800000> : vector<8xf32>
    %36 = vector.multi_reduction <minimumf>, %32, %cst_16 [1] : vector<8x16xf32> to vector<8xf32>
    %37 = vector.shape_cast %36 : vector<8xf32> to vector<8x1xf32>
    %38 = tpu.concatenate %19, %27, %35 in 1 : vector<8x1xf32>, vector<8x1xf32>, vector<8x1xf32> -> vector<8x3xf32>
    %39 = tpu.concatenate %21, %29, %37 in 1 : vector<8x1xf32>, vector<8x1xf32>, vector<8x1xf32> -> vector<8x3xf32>
    %c0_17 = arith.constant 0 : index
    %c0_18 = arith.constant 0 : index
    %40 = vector.load %arg5[%c0_17, %c0_18] : memref<8x3xf32, #tpu.memory_space<vmem>>, vector<8x3xf32>
    %41 = vector.broadcast %13 : vector<8x1xf32> to vector<8x3xf32>
    %42 = arith.subf %41, %38 : vector<8x3xf32>
    %43 = arith.addf %40, %42 : vector<8x3xf32>
    %c0_19 = arith.constant 0 : index
    %c0_20 = arith.constant 0 : index
    %44 = vector.load %arg5[%c0_19, %c0_20] : memref<8x3xf32, #tpu.memory_space<vmem>>, vector<8x3xf32>
    tpu.vector_store %arg5[%c0_19, %c0_20], %43 {strides = array<i32>} : memref<8x3xf32, #tpu.memory_space<vmem>>, vector<8x3xf32>,
    %c0_21 = arith.constant 0 : index
    %c0_22 = arith.constant 0 : index
    %45 = vector.load %arg6[%c0_21, %c0_22] : memref<8x3xf32, #tpu.memory_space<vmem>>, vector<8x3xf32>
    %46 = arith.minimumf %45, %39 : vector<8x3xf32>
    %c0_23 = arith.constant 0 : index
    %c0_24 = arith.constant 0 : index
    %47 = vector.load %arg6[%c0_23, %c0_24] : memref<8x3xf32, #tpu.memory_space<vmem>>, vector<8x3xf32>
    tpu.vector_store %arg6[%c0_23, %c0_24], %46 {strides = array<i32>} : memref<8x3xf32, #tpu.memory_space<vmem>>, vector<8x3xf32>,
    %c0_i32_25 = arith.constant 0 : i32
    %48 = arith.cmpi eq, %arg1, %c0_i32_25 : i32
    %49 = arith.extui %48 : i1 to i32
    %c0_i32_26 = arith.constant 0 : i32
    %50 = arith.cmpi ne, %49, %c0_i32_26 : i32
    scf.if %50 {
      %c0_27 = arith.constant 0 : index
      %c0_28 = arith.constant 0 : index
      %51 = vector.load %arg6[%c0_27, %c0_28] : memref<8x3xf32, #tpu.memory_space<vmem>>, vector<8x3xf32>
      %cst_29 = arith.constant -9.950000e+01 : f32
      %52 = vector.broadcast %cst_29 : f32 to vector<8x3xf32>
      %53 = arith.cmpf ole, %51, %52 : vector<8x3xf32>
      %c0_30 = arith.constant 0 : index
      %c0_31 = arith.constant 0 : index
      %54 = vector.load %arg5[%c0_30, %c0_31] : memref<8x3xf32, #tpu.memory_space<vmem>>, vector<8x3xf32>
      %cst_32 = arith.constant 0x7F800000 : f32
      %55 = vector.broadcast %cst_32 : f32 to vector<8x3xf32>
      %56 = arith.select %53, %55, %54 : vector<8x3xi1>, vector<8x3xf32>
      %cst_33 = arith.constant dense<0x7F800000> : vector<8xf32>
      %57 = vector.multi_reduction <minimumf>, %56, %cst_33 [1] : vector<8x3xf32> to vector<8xf32>
      %58 = vector.shape_cast %57 : vector<8xf32> to vector<8x1xf32>
      %59 = tpu.iota {dimensions = array<i32: 0>} : vector<8x1xi32>
      %c8_i32 = arith.constant 8 : i32
      %60 = arith.muli %arg0, %c8_i32 : i32
      %61 = vector.broadcast %60 : i32 to vector<8x1xi32>
      %62 = arith.addi %59, %61 : vector<8x1xi32>
      %c4_i32 = arith.constant 4 : i32
      %63 = vector.broadcast %c4_i32 : i32 to vector<8x1xi32>
      %64 = arith.cmpi slt, %62, %63 : vector<8x1xi32>
      %cst_34 = arith.constant 0.000000e+00 : f32
      %65 = vector.broadcast %cst_34 : f32 to vector<8x1xf32>
      %66 = arith.select %64, %58, %65 : vector<8x1xi1>, vector<8x1xf32>
      %67 = tpu.iota {dimensions = array<i32: 1>} : vector<8x8xi32>
      %c0_i32_35 = arith.constant 0 : i32
      %68 = vector.broadcast %c0_i32_35 : i32 to vector<8x8xi32>
      %69 = arith.cmpi eq, %67, %68 : vector<8x8xi32>
      %cst_36 = arith.constant 0.000000e+00 : f32
      %70 = vector.shape_cast %66 : vector<8x1xf32> to vector<8x1xf32>
      %71 = vector.broadcast %70 : vector<8x1xf32> to vector<8x8xf32>
      %72 = vector.broadcast %cst_36 : f32 to vector<8x8xf32>
      %73 = arith.select %69, %71, %72 : vector<8x8xi1>, vector<8x8xf32>
      %c0_37 = arith.constant 0 : index
      %c0_38 = arith.constant 0 : index
      %74 = vector.load %arg4[%c0_37, %c0_38] : memref<8x8xf32, #tpu.memory_space<vmem>>, vector<8x8xf32>
      tpu.vector_store %arg4[%c0_37, %c0_38], %73 {strides = array<i32>} : memref<8x8xf32, #tpu.memory_space<vmem>>, vector<8x8xf32>,
    } else {
    }
    return
  }
  func.func @transform_0(%arg0: i32, %arg1: i32) -> (i32, i32) {
    %c0_i32 = arith.constant 0 : i32
    return %arg0, %arg1 : i32, i32
  }
  func.func @transform_1(%arg0: i32, %arg1: i32) -> (i32, i32, i32) {
    %c0_i32 = arith.constant 0 : i32
    %c0_i32_0 = arith.constant 0 : i32
    return %arg0, %c0_i32, %arg1 : i32, i32, i32
  }
  func.func @transform_2(%arg0: i32, %arg1: i32) -> (i32, i32) {
    %c0_i32 = arith.constant 0 : i32
    %c0_i32_0 = arith.constant 0 : i32
    return %arg0, %c0_i32 : i32, i32
  }
}

</mosaic_0001>

<llo_original>
// kernel: agg_over_anns_bce_loss.1
$region0: #{agg_over_anns_bce_loss.1}
  #allocation0 [shape = 'u32[]', space=smem, size = 0x4, offset = 0x4, fixed_abs, tag = 'smem constant byte address 0x4 - core index']
  #allocation1 [shape = 'u32[144,128]{1,0:T(1,128)}', space=vmem, size = 0x12000, scoped, tag = 'internal scratch']
  #allocation2 [shape = 'f32[8,3]{1,0:T(8,128)}', space=vmem, size = 0x1000, scoped, tag = 'scratch operand']
  #allocation3 [shape = 'f32[8,3]{1,0:T(8,128)}', space=vmem, size = 0x1000, scoped, tag = 'scratch operand']
  %s0 = inlined_call_operand.vmem [shape: f32[4,16], index: 0, kind: input, shape index: {}]
  %s1 = inlined_call_operand.vmem [shape: bf16[4,3,16], index: 1, kind: input, shape index: {}]
  %s2 = inlined_call_operand.vmem [shape: f32[8,8], index: 2, kind: output, shape index: {}]
  %s3 = sld [smem:[#allocation0]]
  $region26: #{agg_over_anns_bce_loss.1} parent=0
    _
  %s5 = ssub.s32 1, %s3
  %s6 = scalar_select 0, %s5, %s3
  // Predicated region
  $region2: #{agg_over_anns_bce_loss.1} parent=0 // pred_check
    _
  $region3: #{agg_over_anns_bce_loss.1} parent=0 // pred_check_branch
    %8 = sbr.rel (0) target = $region5
  $region4: #{agg_over_anns_bce_loss.1} parent=0 // pred_region
    _
  $region5: #{agg_over_anns_bce_loss.1} parent=0 // pred_fallthru
    _
  // Predicated region
  $region6: #{agg_over_anns_bce_loss.1} parent=0 // pred_check
    _
  $region7: #{agg_over_anns_bce_loss.1} parent=0 // pred_check_branch
    %10 = sbr.rel (0) target = $region9
  $region8: #{agg_over_anns_bce_loss.1} parent=0 // pred_region
    _
  $region9: #{agg_over_anns_bce_loss.1} parent=0 // pred_fallthru
    _
  %p11 = scmp.eq.s32.totalorder 0, 0
  // Predicated region
  $region10: #{agg_over_anns_bce_loss.1} parent=0 // pred_check
    %p12 = pneg %p11
  $region11: #{agg_over_anns_bce_loss.1} parent=0 // pred_check_branch
    %14 = sbr.rel (%p12) target = $region13
  $region12: #{agg_over_anns_bce_loss.1} parent=0 // pred_region
    %vm15 = vcmask 23552
    %16 = vst.msk [vmem:[#allocation2] sm:$0xff] %vm15, 0.0
    %17 = vst.msk [vmem:[#allocation3] sm:$0xff] %vm15, 0.0
  $region13: #{agg_over_anns_bce_loss.1} parent=0 // pred_fallthru
    _
  %v18 = vld [vmem:[%s0] sm:$0xff]
  %v19 = vmax.f32 %v18, 0.0
  %v20 = vand.u32 2147483647, %v18
  %v21 = vsub.f32 0.0, %v20
  %v22 = vmul.f32 %v21, 1.442695
  %v23 = vpow.pop %v22
  %v24 = vadd.f32 %v23, 1.0
  %v25 = vlog2.pop %v24
  %v26 = vmul.f32 %v25, 0.6931472
  %v27 = vmul.f32 -0.5, %v23
  %v28 = vadd.f32 %v27, 1.0
  %v29 = vmul.f32 %v28, %v23
  %v30 = vand.u32 2147483647, %v23
  %vm31 = vcmp.lt.f32.partialorder %v30, 0.0004427343
  %v32 = vsel %vm31, %v29, %v26
  %v33 = vadd.f32 %v19, %v32
  %vm34 = vcmask 130048
  %v35 = vsel %vm34, %v33, 0.0
  %36 = vadd.xlane.f32.xlu0 %v35
  %v37 = vpop.xlane.xlu0 %36
  %v38 = vld [vmem:[%s1] sm:$0x1]
  %v39 = vld [vmem:[%s1 + $0x2] sm:$0x1]
  %v40 = vld [vmem:[%s1 + $0x4] sm:$0x1]
  %v41 = vld [vmem:[%s1 + $0x6] sm:$0x1]
  %v42 = vld [vmem:[%s1 + $0x8] sm:$0x1]
  %v43 = vld [vmem:[%s1 + $0xa] sm:$0x1]
  %v44 = vld [vmem:[%s1 + $0xc] sm:$0x1]
  %v45 = vld [vmem:[%s1 + $0xe] sm:$0x1]
  %v46 = vunpack.c.l.bf16 %v38
  %v47 = vunpack.c.l.bf16 %v39
  %v48 = vunpack.c.l.bf16 %v40
  %v49 = vunpack.c.l.bf16 %v41
  %v50 = vunpack.c.l.bf16 %v42
  %v51 = vunpack.c.l.bf16 %v43
  %v52 = vunpack.c.l.bf16 %v44
  %v53 = vunpack.c.l.bf16 %v45
  %v62 = vlaneseq
  %v63 = vshrl.u32 %v62, 7
  %v64 = vsub.s32 0, %v63
  %v65 = vrot.slane %v46, %v64
  %v66 = vlaneseq
  %v67 = vshrl.u32 %v66, 7
  %v68 = vsub.s32 0, %v67
  %v69 = vrot.slane %v47, %v68
  %v70 = vlaneseq
  %v71 = vshrl.u32 %v70, 7
  %v72 = vsub.s32 0, %v71
  %v73 = vrot.slane %v48, %v72
  %v74 = vlaneseq
  %v75 = vshrl.u32 %v74, 7
  %v76 = vsub.s32 0, %v75
  %v77 = vrot.slane %v49, %v76
  %v78 = vlaneseq
  %v79 = vshrl.u32 %v78, 7
  %v80 = vsub.s32 0, %v79
  %v81 = vrot.slane %v50, %v80
  %v82 = vlaneseq
  %v83 = vshrl.u32 %v82, 7
  %v84 = vsub.s32 0, %v83
  %v85 = vrot.slane %v51, %v84
  %v86 = vlaneseq
  %v87 = vshrl.u32 %v86, 7
  %v88 = vsub.s32 0, %v87
  %v89 = vrot.slane %v52, %v88
  %v90 = vlaneseq
  %v91 = vshrl.u32 %v90, 7
  %v92 = vsub.s32 0, %v91
  %v93 = vrot.slane %v53, %v92
  %vm94 = vcmask 1041409
  %v95 = vsel %vm94, %v69, %v65
  %vm96 = vcmask 1042434
  %v97 = vsel %vm96, %v73, %v95
  %vm98 = vcmask 1043459
  %v99 = vsel %vm98, %v77, %v97
  %vm100 = vcmask 1044484
  %v101 = vsel %vm100, %v81, %v99
  %vm102 = vcmask 1045509
  %v103 = vsel %vm102, %v85, %v101
  %vm104 = vcmask 1046534
  %v105 = vsel %vm104, %v89, %v103
  %vm106 = vcmask 1047559
  %v107 = vsel %vm106, %v93, %v105
  %v109 = vmul.f32 %v18, %v107
  %v110 = vsel %vm34, %v109, 0.0
  %111 = vadd.xlane.f32.xlu0 %v110
  %v112 = vpop.xlane.xlu0 %111
  %v113 = vsel %vm34, %v107, inf
  %114 = vmin.xlane.f32.xlu0 %v113
  %v115 = vpop.xlane.xlu0 %114
  %v116 = vlaneseq
  %v117 = vshrl.u32 %v116, 7
  %v118 = vsub.s32 1, %v117
  %v119 = vrot.slane %v46, %v118
  %v120 = vlaneseq
  %v121 = vshrl.u32 %v120, 7
  %v122 = vsub.s32 1, %v121
  %v123 = vrot.slane %v47, %v122
  %v124 = vlaneseq
  %v125 = vshrl.u32 %v124, 7
  %v126 = vsub.s32 1, %v125
  %v127 = vrot.slane %v48, %v126
  %v128 = vlaneseq
  %v129 = vshrl.u32 %v128, 7
  %v130 = vsub.s32 1, %v129
  %v131 = vrot.slane %v49, %v130
  %v132 = vlaneseq
  %v133 = vshrl.u32 %v132, 7
  %v134 = vsub.s32 1, %v133
  %v135 = vrot.slane %v50, %v134
  %v136 = vlaneseq
  %v137 = vshrl.u32 %v136, 7
  %v138 = vsub.s32 1, %v137
  %v139 = vrot.slane %v51, %v138
  %v140 = vlaneseq
  %v141 = vshrl.u32 %v140, 7
  %v142 = vsub.s32 1, %v141
  %v143 = vrot.slane %v52, %v142
  %v144 = vlaneseq
  %v145 = vshrl.u32 %v144, 7
  %v146 = vsub.s32 1, %v145
  %v147 = vrot.slane %v53, %v146
  %v148 = vsel %vm94, %v123, %v119
  %v149 = vsel %vm96, %v127, %v148
  %v150 = vsel %vm98, %v131, %v149
  %v151 = vsel %vm100, %v135, %v150
  %v152 = vsel %vm102, %v139, %v151
  %v153 = vsel %vm104, %v143, %v152
  %v154 = vsel %vm106, %v147, %v153
  %v156 = vmul.f32 %v18, %v154
  %v157 = vsel %vm34, %v156, 0.0
  %158 = vadd.xlane.f32.xlu0 %v157
  %v159 = vpop.xlane.xlu0 %158
  %v160 = vsel %vm96, %v123, %v119
  %v161 = vsel %vm98, %v127, %v160
  %v162 = vsel %vm100, %v131, %v161
  %v163 = vsel %vm102, %v135, %v162
  %v164 = vsel %vm104, %v139, %v163
  %v165 = vsel %vm106, %v143, %v164
  %vm168 = vcmask 130049
  %v169 = vsel %vm168, %v165, inf
  %170 = vmin.xlane.f32.xlu0 %v169
  %v171 = vpop.xlane.xlu0 %170
  %vm172 = vcmask 122880
  %v173 = vsel %vm172, %v147, inf
  %174 = vmin.xlane.f32.xlu0 %v173
  %v175 = vpop.xlane.xlu0 %174
  %v176 = vld [vmem:[%s1] sm:$0x2]
  %v177 = vld [vmem:[%s1 + $0x2] sm:$0x2]
  %v178 = vld [vmem:[%s1 + $0x4] sm:$0x2]
  %v179 = vld [vmem:[%s1 + $0x6] sm:$0x2]
  %v180 = vld [vmem:[%s1 + $0x8] sm:$0x2]
  %v181 = vld [vmem:[%s1 + $0xa] sm:$0x2]
  %v182 = vld [vmem:[%s1 + $0xc] sm:$0x2]
  %v183 = vld [vmem:[%s1 + $0xe] sm:$0x2]
  %v184 = vunpack.c.l.bf16 %v176
  %v185 = vunpack.c.l.bf16 %v177
  %v186 = vunpack.c.l.bf16 %v178
  %v187 = vunpack.c.l.bf16 %v179
  %v188 = vunpack.c.l.bf16 %v180
  %v189 = vunpack.c.l.bf16 %v181
  %v190 = vunpack.c.l.bf16 %v182
  %v191 = vunpack.c.l.bf16 %v183
  %v200 = vlaneseq
  %v201 = vshrl.u32 %v200, 7
  %v202 = vsub.s32 2, %v201
  %v203 = vrot.slane %v184, %v202
  %v204 = vlaneseq
  %v205 = vshrl.u32 %v204, 7
  %v206 = vsub.s32 2, %v205
  %v207 = vrot.slane %v185, %v206
  %v208 = vlaneseq
  %v209 = vshrl.u32 %v208, 7
  %v210 = vsub.s32 2, %v209
  %v211 = vrot.slane %v186, %v210
  %v212 = vlaneseq
  %v213 = vshrl.u32 %v212, 7
  %v214 = vsub.s32 2, %v213
  %v215 = vrot.slane %v187, %v214
  %v216 = vlaneseq
  %v217 = vshrl.u32 %v216, 7
  %v218 = vsub.s32 2, %v217
  %v219 = vrot.slane %v188, %v218
  %v220 = vlaneseq
  %v221 = vshrl.u32 %v220, 7
  %v222 = vsub.s32 2, %v221
  %v223 = vrot.slane %v189, %v222
  %v224 = vlaneseq
  %v225 = vshrl.u32 %v224, 7
  %v226 = vsub.s32 2, %v225
  %v227 = vrot.slane %v190, %v226
  %v228 = vlaneseq
  %v229 = vshrl.u32 %v228, 7
  %v230 = vsub.s32 2, %v229
  %v231 = vrot.slane %v191, %v230
  %v232 = vsel %vm94, %v207, %v203
  %v233 = vsel %vm96, %v211, %v232
  %v234 = vsel %vm98, %v215, %v233
  %v235 = vsel %vm100, %v219, %v234
  %v236 = vsel %vm102, %v223, %v235
  %v237 = vsel %vm104, %v227, %v236
  %v238 = vsel %vm106, %v231, %v237
  %v240 = vmul.f32 %v18, %v238
  %v241 = vsel %vm34, %v240, 0.0
  %242 = vadd.xlane.f32.xlu0 %v241
  %v243 = vpop.xlane.xlu0 %242
  %v244 = vsel %vm98, %v207, %v203
  %v245 = vsel %vm100, %v211, %v244
  %v246 = vsel %vm102, %v215, %v245
  %v247 = vsel %vm104, %v219, %v246
  %v248 = vsel %vm106, %v223, %v247
  %v249 = vsel %vm94, %v231, %v227
  %vm252 = vcmask 130050
  %v253 = vsel %vm252, %v248, inf
  %254 = vmin.xlane.f32.xlu0 %v253
  %v255 = vpop.xlane.xlu0 %254
  %vm256 = vcmask 123904
  %v257 = vsel %vm256, %v249, inf
  %258 = vmin.xlane.f32.xlu0 %v257
  %v259 = vpop.xlane.xlu0 %258
  %vm260 = vcmask 7168
  %v261 = vsel %vm260, %v112, %v159
  %vm262 = vcmask 15360
  %v263 = vsel %vm262, %v261, %v243
  %vm266 = vcmask 1046528
  %v267 = vrot.slane %v171, 1
  %v268 = vrot.slane %v175, 1
  %v269 = vsel %vm266, %v267, %v268
  %vm273 = vcmask 1045504
  %v274 = vrot.slane %v255, 2
  %v275 = vrot.slane %v259, 2
  %v276 = vsel %vm273, %v274, %v275
  %v278 = vsel %vm260, %v115, %v269
  %v279 = vsel %vm262, %v278, %v276
  %v280 = vld [vmem:[#allocation2] sm:$0xff]
  %v281 = vsub.f32 %v37, %v263
  %v282 = vadd.f32 %v280, %v281
  %vm283 = vcmask 23552
  %284 = vst.msk [vmem:[#allocation2] sm:$0xff] %vm283, %v282
  %v285 = vld [vmem:[#allocation3] sm:$0xff]
  %v286 = vmin.f32 %v285, %v279
  %287 = vst.msk [vmem:[#allocation3] sm:$0xff] %vm283, %v286
  // Predicated region
  $region14: #{agg_over_anns_bce_loss.1} parent=0 // pred_check
    %p288 = pneg %p11
  $region15: #{agg_over_anns_bce_loss.1} parent=0 // pred_check_branch
    %290 = sbr.rel (%p288) target = $region17
  $region16: #{agg_over_anns_bce_loss.1} parent=0 // pred_region
    %v291 = vld [vmem:[#allocation3] sm:$0xff]
    %vm292 = vcmp.le.f32.partialorder %v291, -99.5
    %v293 = vld [vmem:[#allocation2] sm:$0xff]
    %v294 = vsel %vm292, inf, %v293
    %v295 = vsel %vm283, %v294, inf
    %296 = vmin.xlane.f32.xlu0 %v295
    %v297 = vpop.xlane.xlu0 %296
    %v298 = vlaneseq
    %v299 = vshrl.u32 %v298, 7
    %s300 = smul.u32 0, 8
    %v301 = vstv %s300
    %v302 = vadd.s32 %v299, %v301
    %vm303 = vcmp.lt.s32.totalorder %v302, 4
    %v304 = vsel %vm303, %v297, 0.0
    %v305 = vlaneseq
    %v306 = vand.u32 %v305, 127
    %vm307 = vcmp.eq.s32.totalorder %v306, 0
    %v308 = vsel %vm307, %v304, 0.0
    %vm309 = vcmask 64512
    %310 = vst.msk [vmem:[%s2] sm:$0xff] %vm309, %v308
  $region17: #{agg_over_anns_bce_loss.1} parent=0 // pred_fallthru
    _
  // Predicated region
  $region18: #{agg_over_anns_bce_loss.1} parent=0 // pred_check
    _
  $region19: #{agg_over_anns_bce_loss.1} parent=0 // pred_check_branch
    %312 = sbr.rel (0) target = $region21
  $region20: #{agg_over_anns_bce_loss.1} parent=0 // pred_region
    _
  $region21: #{agg_over_anns_bce_loss.1} parent=0 // pred_fallthru
    _
  // Predicated region
  $region22: #{agg_over_anns_bce_loss.1} parent=0 // pred_check
    _
  $region23: #{agg_over_anns_bce_loss.1} parent=0 // pred_check_branch
    %314 = sbr.rel (0) target = $region25
  $region24: #{agg_over_anns_bce_loss.1} parent=0 // pred_region
    _
  $region25: #{agg_over_anns_bce_loss.1} parent=0 // pred_fallthru
    _

</llo_original>
